<compile_context>
chip_gen: v7x
topology: tpu7x:2x2x1
jax: 0.10.0
libtpu: 0.0.40
codegen_flags: <defaults>
</compile_context>

<pallas_src>
import functools
import numpy as np
import jax
import jax.numpy as jnp
from jax.experimental import pallas as pl
from jax.experimental.pallas import tpu as pltpu

LANE = 128


def _round_up(n, m):
    return ((n + m - 1) // m) * m


# ----------------------------- weight setup (host) ---------------------------

def _lanczos(x, a=3.0):
    x = np.asarray(x, dtype=np.float64)
    return np.where(np.abs(x) < a, np.sinc(x) * np.sinc(x / a), 0.0)


def _pil_resample_weights(in_size, out_size, support=3.0):
    """PIL-style separable Lanczos resampling matrix, shape (out_size, in_size)."""
    W = np.zeros((out_size, in_size), dtype=np.float64)
    scale = in_size / out_size
    filterscale = max(scale, 1.0)
    supp = support * filterscale
    ss = 1.0 / filterscale
    for xx in range(out_size):
        center = (xx + 0.5) * scale
        xmin = int(max(0, np.floor(center - supp)))
        xmax = int(min(in_size, np.ceil(center + supp)))
        ks = _lanczos((np.arange(xmin, xmax, dtype=np.float64) - center + 0.5) * ss)
        ks = ks / ks.sum()
        W[xx, xmin:xmax] = ks
    return W.astype(np.float32)


def _padded_weights(in_size, out_core, out_full, offset):
    """(out_full, in_size) matrix whose rows [offset, offset+out_core) hold the
    Lanczos resampling weights; all other rows are zero, so the center-pad
    placement is baked into the matmul itself (single lane-dense store)."""
    core = _pil_resample_weights(in_size, out_core)
    w = np.zeros((out_full, in_size), dtype=np.float32)
    w[offset:offset + out_core, :] = core
    return w


# -------------------------------- Pallas kernels ------------------------------

def _fit_resize_kernel(x_ref, wh_ref, wwt_ref, out_ref, *,
                       top, left, new_h, new_w, pad_val):
    # x_ref   : (C, H, W)        f32 image (native layout, cast-free)
    # wh_ref  : (C, out_h, H)    f32 vertical weights, pad rows baked in as zeros,
    #                            broadcast over C on the host (free constant)
    # wwt_ref : (C, W, P)        f32 horizontal weights^T, pad cols + lane padding
    #                            (P = round_up(out_w, 128)) baked in as zeros
    # out_ref : (C, out_h, P)    f32; P is a multiple of 128 -> one unmasked store
    c, out_h, p = out_ref.shape
    x = x_ref[...]

    # Horizontal pass: batched matmul over C (no per-channel slices/concat),
    # f32 accumulation.  N = P is lane-dense.
    t = jnp.einsum('chw,cwp->chp', x, wwt_ref[...],
                   preferred_element_type=jnp.float32)              # (C, H, P)
    # Vertical pass: batched matmul over C; intermediate stays f32 (no second
    # quantization), accumulation f32.
    res = jnp.einsum('coh,chp->cop', wh_ref[...], t,
                     preferred_element_type=jnp.float32)             # (C, out_h, P)

    if pad_val is not None and pad_val != 0.0:
        # Baked-in zero weight rows/cols produce an exact-zero border; for a
        # non-zero fill overwrite it with one select before the single store.
        # 3-D iotas along dims 1/2 -> no integer modulo on the VPU.
        rows = jax.lax.broadcasted_iota(jnp.int32, (c, out_h, p), 1)
        cols = jax.lax.broadcasted_iota(jnp.int32, (c, out_h, p), 2)
        inside = ((rows >= top) & (rows < top + new_h)
                  & (cols >= left) & (cols < left + new_w))
        res = jnp.where(inside, res, jnp.float32(pad_val))

    out_ref[...] = res.astype(out_ref.dtype)   # single full lane-dense store


def _pad_kernel(x_ref, out_ref, *, top, left, pad_val):
    # s == 1 fast path: no resize, just a centered constant pad.  The padded
    # value is composed in VMEM (concatenate with constant borders) and written
    # with ONE full lane-dense store — no fill-then-masked-sub-window rewrite.
    c, h, w = x_ref.shape
    _, out_h, p = out_ref.shape
    x = x_ref[...].astype(out_ref.dtype)

    cols = []
    if left > 0:
        cols.append(jnp.full((c, h, left), pad_val, out_ref.dtype))
    cols.append(x)
    if p - left - w > 0:
        cols.append(jnp.full((c, h, p - left - w), pad_val, out_ref.dtype))
    band = jnp.concatenate(cols, axis=2) if len(cols) > 1 else cols[0]

    rows = []
    if top > 0:
        rows.append(jnp.full((c, top, p), pad_val, out_ref.dtype))
    rows.append(band)
    bottom = out_h - top - h
    if bottom > 0:
        rows.append(jnp.full((c, bottom, p), pad_val, out_ref.dtype))
    res = jnp.concatenate(rows, axis=1) if len(rows) > 1 else rows[0]

    out_ref[...] = res


# --------------------------------- wrapper ------------------------------------

def fit_forward(x, bounds, *, grow=True, pad=None):
    """Pallas equivalent of Fit.forward. x: (C, H, W) float32."""
    c, h, w = x.shape
    bw, bh = (bounds, bounds) if isinstance(bounds, int) else bounds

    s = min(bw / w, bh / h)
    if not grow:
        s = min(s, 1.0)
    new_h, new_w = (int(round(h * s)), int(round(w * s))) if s != 1 else (h, w)

    if pad is None:
        out_h, out_w, top, left, pad_val = new_h, new_w, 0, 0, None
    else:
        ph, pw = bh - new_h, bw - new_w
        assert ph >= 0 and pw >= 0, "bounds smaller than the resized image"
        left, top = pw // 2, ph // 2
        out_h, out_w = bh, bw
        pad_val = float(pad)

    p = _round_up(out_w, LANE)   # lane-dense output width; sliced back below

    # ---- s == 1 fast paths: no resize -> skip the matmul kernel entirely ----
    if s == 1:
        if pad is None or (top == 0 and left == 0 and out_h == h and out_w == w):
            return x
        kernel = functools.partial(_pad_kernel, top=top, left=left, pad_val=pad_val)
        out = pl.pallas_call(
            kernel,
            out_shape=jax.ShapeDtypeStruct((c, out_h, p), x.dtype),
            grid=(1,),
            in_specs=[pl.BlockSpec((c, h, w), lambda i: (0, 0, 0))],
            out_specs=pl.BlockSpec((c, out_h, p), lambda i: (0, 0, 0)),
        )(x)
        return out[:, :, :out_w]

    # ---- resize (+ optional pad) path ----
    # Host-side constants (zero runtime cost): pad placement, lane padding and
    # the channel broadcast are all baked into the weight arrays.
    wh = _padded_weights(h, new_h, out_h, top)                       # (out_h, h)
    whb = np.ascontiguousarray(np.broadcast_to(wh[None], (c, out_h, h)))
    wwt = np.zeros((w, p), dtype=np.float32)
    wwt[:, :out_w] = _padded_weights(w, new_w, out_w, left).T        # (w, p)
    wwtb = np.ascontiguousarray(np.broadcast_to(wwt[None], (c, w, p)))

    flops = 2 * c * h * w * p + 2 * c * out_h * h * p
    bytes_accessed = 4 * (c * h * w + c * w * p + c * out_h * h + c * out_h * p)

    kernel = functools.partial(_fit_resize_kernel, top=top, left=left,
                               new_h=new_h, new_w=new_w, pad_val=pad_val)
    out = pl.pallas_call(
        kernel,
        out_shape=jax.ShapeDtypeStruct((c, out_h, p), x.dtype),
        grid=(1,),
        in_specs=[
            pl.BlockSpec((c, h, w), lambda i: (0, 0, 0)),
            pl.BlockSpec((c, out_h, h), lambda i: (0, 0, 0)),
            pl.BlockSpec((c, w, p), lambda i: (0, 0, 0)),
        ],
        out_specs=pl.BlockSpec((c, out_h, p), lambda i: (0, 0, 0)),
        compiler_params=pltpu.CompilerParams(dimension_semantics=("arbitrary",)),
        cost_estimate=pl.CostEstimate(flops=flops, transcendentals=0,
                                      bytes_accessed=bytes_accessed),
    )(x, jnp.asarray(whb), jnp.asarray(wwtb))
    return out[:, :, :out_w]


# -------------------------- reference (numpy, float64) -------------------------

def fit_reference(x, bounds, *, grow=True, pad=None):
    xn = np.asarray(x, dtype=np.float64)
    c, h, w = xn.shape
    bw, bh = (bounds, bounds) if isinstance(bounds, int) else bounds
    s = min(bw / w, bh / h)
    if not grow:
        s = min(s, 1.0)
    if s != 1:
        new_h, new_w = int(round(h * s)), int(round(w * s))
        wh = _pil_resample_weights(h, new_h).astype(np.float64)
        ww = _pil_resample_weights(w, new_w).astype(np.float64)
        y = np.einsum("oh,chw,pw->cop", wh, xn, ww)
    else:
        new_h, new_w = h, w
        y = xn
    if pad is None:
        return y.astype(np.float32)
    ph, pw = bh - new_h, bw - new_w
    left, top = pw // 2, ph // 2
    out = np.full((c, bh, bw), float(pad), dtype=np.float64)
    out[:, top:top + new_h, left:left + new_w] = y
    return out.astype(np.float32)


# ------------------------------------ main -------------------------------------

if __name__ == "__main__":
    key = jax.random.PRNGKey(0)
    k1, k2, k3 = jax.random.split(key, 3)

    # All in-kernel math is f32; atol covers possible reduced-precision internal
    # passes of the MXU for f32 matmuls.
    ATOL = 2e-2

    # 1) Upscale (12,16) -> (18,24), center-pad to (24,24) with 0 fill
    #    (zero fill comes entirely from the baked weight rows/cols).
    x = jax.random.uniform(k1, (3, 12, 16), dtype=jnp.float32)
    out = jax.block_until_ready(fit_forward(x, 24, grow=True, pad=0.0))
    ref = fit_reference(x, 24, grow=True, pad=0.0)
    assert out.shape == (3, 24, 24), out.shape
    np.testing.assert_allclose(np.asarray(out), ref, atol=ATOL, rtol=0)

    # 2) Resize only (pad=None).
    out2 = jax.block_until_ready(fit_forward(x, 24, grow=True, pad=None))
    ref2 = fit_reference(x, 24, grow=True, pad=None)
    assert out2.shape == (3, 18, 24), out2.shape
    np.testing.assert_allclose(np.asarray(out2), ref2, atol=ATOL, rtol=0)

    # 3) Other aspect ratio, non-zero pad fill (exercises the iota/where mask).
    y = jax.random.uniform(k2, (3, 16, 12), dtype=jnp.float32)
    out3 = jax.block_until_ready(fit_forward(y, 24, grow=True, pad=0.25))
    ref3 = fit_reference(y, 24, grow=True, pad=0.25)
    assert out3.shape == (3, 24, 24), out3.shape
    np.testing.assert_allclose(np.asarray(out3), ref3, atol=ATOL, rtol=0)

    # 4) s == 1 fast paths (grow=False): pad-only kernel, then pure pass-through.
    z = jax.random.uniform(k3, (3, 16, 16), dtype=jnp.float32)
    out4 = jax.block_until_ready(fit_forward(z, 24, grow=False, pad=0.5))
    ref4 = fit_reference(z, 24, grow=False, pad=0.5)
    assert out4.shape == (3, 24, 24), out4.shape
    np.testing.assert_allclose(np.asarray(out4), ref4, atol=1e-6, rtol=0)

    out5 = fit_forward(z, 24, grow=False, pad=None)
    np.testing.assert_allclose(np.asarray(out5), np.asarray(z))

    print("KERNEL_OK")
</pallas_src>

<mosaic_0001>
module attributes {stable_mosaic.version = 11 : i64} {
  func.func @_fit_resize_kernel(%arg0: i32, %arg1: memref<3x12x16xf32, #tpu.memory_space<vmem>>, %arg2: memref<3x24x12xf32, #tpu.memory_space<vmem>>, %arg3: memref<3x16x128xf32, #tpu.memory_space<vmem>>, %arg4: memref<3x24x128xf32, #tpu.memory_space<vmem>>) attributes {dimension_semantics = [#tpu.dimension_semantics<arbitrary>], iteration_bounds = array<i64: 1>, scalar_prefetch = 0 : i64, scratch_operands = 0 : i64, tpu.core_type = #tpu.core_type<tc>, window_params = [{pipeline_mode = #tpu.pipeline_mode<synchronous>, transform_indices = @transform_0, window_bounds = array<i64: 3, 12, 16>}, {pipeline_mode = #tpu.pipeline_mode<synchronous>, transform_indices = @transform_1, window_bounds = array<i64: 3, 24, 12>}, {pipeline_mode = #tpu.pipeline_mode<synchronous>, transform_indices = @transform_2, window_bounds = array<i64: 3, 16, 128>}, {pipeline_mode = #tpu.pipeline_mode<synchronous>, transform_indices = @transform_3, window_bounds = array<i64: 3, 24, 128>}]} {
    %c0 = arith.constant 0 : index
    %c0_0 = arith.constant 0 : index
    %c0_1 = arith.constant 0 : index
    %0 = vector.load %arg1[%c0, %c0_0, %c0_1] : memref<3x12x16xf32, #tpu.memory_space<vmem>>, vector<3x12x16xf32>
    %c0_2 = arith.constant 0 : index
    %c0_3 = arith.constant 0 : index
    %c0_4 = arith.constant 0 : index
    %1 = vector.load %arg3[%c0_2, %c0_3, %c0_4] : memref<3x16x128xf32, #tpu.memory_space<vmem>>, vector<3x16x128xf32>
    "tpu.trace_start"() <{level = 10 : i32, message = "chw,cwp->chp"}> : () -> ()
    %cst = arith.constant dense<0.000000e+00> : vector<3x12x128xf32>
    %2 = tpu.matmul %0, %1, %cst {dimension_numbers = #tpu.dot_dimension_numbers<[2], [1], [1], [2], [0, 0, 0, 1, 1, 2], [0], [0]>} : vector<3x12x16xf32>, vector<3x16x128xf32>, vector<3x12x128xf32> -> vector<3x12x128xf32>
    "tpu.trace_stop"() : () -> ()
    %c0_5 = arith.constant 0 : index
    %c0_6 = arith.constant 0 : index
    %c0_7 = arith.constant 0 : index
    %3 = vector.load %arg2[%c0_5, %c0_6, %c0_7] : memref<3x24x12xf32, #tpu.memory_space<vmem>>, vector<3x24x12xf32>
    "tpu.trace_start"() <{level = 10 : i32, message = "coh,chp->cop"}> : () -> ()
    %cst_8 = arith.constant dense<0.000000e+00> : vector<3x24x128xf32>
    %4 = tpu.matmul %3, %2, %cst_8 {dimension_numbers = #tpu.dot_dimension_numbers<[2], [1], [1], [2], [0, 0, 0, 1, 1, 2], [0], [0]>} : vector<3x24x12xf32>, vector<3x12x128xf32>, vector<3x24x128xf32> -> vector<3x24x128xf32>
    "tpu.trace_stop"() : () -> ()
    %c0_9 = arith.constant 0 : index
    %c0_10 = arith.constant 0 : index
    %c0_11 = arith.constant 0 : index
    %5 = vector.load %arg4[%c0_9, %c0_10, %c0_11] : memref<3x24x128xf32, #tpu.memory_space<vmem>>, vector<3x24x128xf32>
    tpu.vector_store %arg4[%c0_9, %c0_10, %c0_11], %4 {strides = array<i32>} : memref<3x24x128xf32, #tpu.memory_space<vmem>>, vector<3x24x128xf32>,
    return
  }
  func.func @transform_0(%arg0: i32) -> (i32, i32, i32) {
    %c0_i32 = arith.constant 0 : i32
    %c0_i32_0 = arith.constant 0 : i32
    %c0_i32_1 = arith.constant 0 : i32
    %c0_i32_2 = arith.constant 0 : i32
    return %c0_i32, %c0_i32_0, %c0_i32_1 : i32, i32, i32
  }
  func.func @transform_1(%arg0: i32) -> (i32, i32, i32) {
    %c0_i32 = arith.constant 0 : i32
    %c0_i32_0 = arith.constant 0 : i32
    %c0_i32_1 = arith.constant 0 : i32
    %c0_i32_2 = arith.constant 0 : i32
    return %c0_i32, %c0_i32_0, %c0_i32_1 : i32, i32, i32
  }
  func.func @transform_2(%arg0: i32) -> (i32, i32, i32) {
    %c0_i32 = arith.constant 0 : i32
    %c0_i32_0 = arith.constant 0 : i32
    %c0_i32_1 = arith.constant 0 : i32
    %c0_i32_2 = arith.constant 0 : i32
    return %c0_i32, %c0_i32_0, %c0_i32_1 : i32, i32, i32
  }
  func.func @transform_3(%arg0: i32) -> (i32, i32, i32) {
    %c0_i32 = arith.constant 0 : i32
    %c0_i32_0 = arith.constant 0 : i32
    %c0_i32_1 = arith.constant 0 : i32
    %c0_i32_2 = arith.constant 0 : i32
    return %c0_i32, %c0_i32_0, %c0_i32_1 : i32, i32, i32
  }
}

</mosaic_0001>

<llo_original>
// kernel: tpu_custom_call.1
$region0: #{tpu_custom_call.1}
  #allocation0 [shape = 'u32[]', space=smem, size = 0x4, offset = 0x4, fixed_abs, tag = 'smem constant byte address 0x4 - core index']
  #allocation1 [shape = 'u32[144,128]{1,0:T(1,128)}', space=vmem, size = 0x12000, scoped, tag = 'internal scratch']
  %s0 = inlined_call_operand.vmem [shape: f32[3,12,16], index: 0, kind: input, shape index: {}]
  %s1 = inlined_call_operand.vmem [shape: f32[3,24,12], index: 1, kind: input, shape index: {}]
  %s2 = inlined_call_operand.vmem [shape: f32[3,16,128], index: 2, kind: input, shape index: {}]
  %s3 = inlined_call_operand.hbm [shape: f32[3,24,128], index: 3, kind: output, shape index: {}]
  %s4 = sld [smem:[#allocation0]]
  $region22: #{tpu_custom_call.1} parent=0
    _
  %s6 = ssub.s32 1, %s4
  %s7 = scalar_select 0, %s6, %s4
  $region1: #{tpu_custom_call.1} parent=0
    #allocation2 [shape = 'u8[36864]{0}', space=vmem, size = 0x9000, scoped, tag = 'output window, operand 0, single buffered']
    #allocation3 [shape = 's32[1]{0}', space=sflag, size = 0x4, scoped, tag = 'scoped memory for tpu_custom_call.1']
    %8 = vsyncpa [#allocation3], 0
    // Predicated region
    $region2: #{tpu_custom_call.1} parent=1 // pred_check
      _
    $region3: #{tpu_custom_call.1} parent=1 // pred_check_branch
      %10 = sbr.rel (0) target = $region5
    $region4: #{tpu_custom_call.1} parent=1 // pred_region
      _
    $region5: #{tpu_custom_call.1} parent=1 // pred_fallthru
      _
    // Predicated region
    $region6: #{tpu_custom_call.1} parent=1 // pred_check
      _
    $region7: #{tpu_custom_call.1} parent=1 // pred_check_branch
      %12 = sbr.rel (0) target = $region9
    $region8: #{tpu_custom_call.1} parent=1 // pred_region
      _
    $region9: #{tpu_custom_call.1} parent=1 // pred_fallthru
      _
    // Predicated region
    $region10: #{tpu_custom_call.1} parent=1 // pred_check
      _
    $region11: #{tpu_custom_call.1} parent=1 // pred_check_branch
      %14 = sbr.rel (0) target = $region13
    $region12: #{tpu_custom_call.1} parent=1 // pred_region
      _
    $region13: #{tpu_custom_call.1} parent=1 // pred_fallthru
      _
    %v15 = vld [vmem:[%s0] sm:$0xff]
    %v16 = vld [vmem:[%s0 + $0x8] sm:$0xf]
    %v17 = vld [vmem:[%s0 + $0x10] sm:$0xff]
    %v18 = vld [vmem:[%s0 + $0x18] sm:$0xf]
    %v19 = vld [vmem:[%s0 + $0x20] sm:$0xff]
    %v20 = vld [vmem:[%s0 + $0x28] sm:$0xf]
    %v21 = vld [vmem:[%s2] sm:$0xff]
    %v22 = vld [vmem:[%s2 + $0x8] sm:$0xff]
    %v23 = vld [vmem:[%s2 + $0x10] sm:$0xff]
    %v24 = vld [vmem:[%s2 + $0x18] sm:$0xff]
    %v25 = vld [vmem:[%s2 + $0x20] sm:$0xff]
    %v26 = vld [vmem:[%s2 + $0x28] sm:$0xff]
    %vm27 = vcmask 130048
    %v29 = vsel %vm27, %v15, 0
    %v32 = vsel %vm27, %v16, 0
    %34 = vmatprep.subr.mxu0 0.0
    %35 = vmatpush1.msra.mxu0 %v21
    %36 = vmatprep.subr.mxu0 0.0
    %37 = vmatpush1.msra.mxu0 %v22
    %38 = vmatprep.subr.mxu0 0.0
    %39 = vmatpush1.msra.mxu0 0.0
    %40 = vmatprep.subr.mxu0 0.0
    %41 = vmatpush1.msra.mxu0 0.0
    %42 = vmatprep.subr.mxu0 0.0
    %43 = vmatpush1.msra.mxu0 0.0
    %44 = vmatprep.subr.mxu0 0.0
    %45 = vmatpush1.msra.mxu0 0.0
    %46 = vmatprep.subr.mxu0 0.0
    %47 = vmatpush1.msra.mxu0 0.0
    %48 = vmatprep.subr.mxu0 0.0
    %49 = vmatpush1.msra.mxu0 0.0
    %50 = vmatprep.subr.mxu0 0.0
    %51 = vmatpush1.msra.mxu0 0.0
    %52 = vmatprep.subr.mxu0 0.0
    %53 = vmatpush1.msra.mxu0 0.0
    %54 = vmatprep.subr.mxu0 0.0
    %55 = vmatpush1.msra.mxu0 0.0
    %56 = vmatprep.subr.mxu0 0.0
    %57 = vmatpush1.msra.mxu0 0.0
    %58 = vmatprep.subr.mxu0 0.0
    %59 = vmatpush1.msra.mxu0 0.0
    %60 = vmatprep.subr.mxu0 0.0
    %61 = vmatpush1.msra.mxu0 0.0
    %62 = vmatprep.subr.mxu0 0.0
    %63 = vmatpush1.msra.mxu0 0.0
    %64 = vmatprep.subr.mxu0 0.0
    %65 = vmatpush1.msra.mxu0 0.0
    %66 = vmatprep.subr.mxu0 0.0
    %67 = vmatpush1.msra.mxu0 0.0
    %68 = vmatprep.subr.mxu0 0.0
    %69 = vmatpush1.msra.mxu0 0.0
    %70 = vmatprep.subr.mxu0 0.0
    %71 = vmatpush1.msra.mxu0 0.0
    %72 = vmatprep.subr.mxu0 0.0
    %73 = vmatpush1.msra.mxu0 0.0
    %74 = vmatprep.subr.mxu0 0.0
    %75 = vmatpush1.msra.mxu0 0.0
    %76 = vmatprep.subr.mxu0 0.0
    %77 = vmatpush1.msra.mxu0 0.0
    %78 = vmatprep.subr.mxu0 0.0
    %79 = vmatpush1.msra.mxu0 0.0
    %80 = vmatprep.subr.mxu0 0.0
    %81 = vmatpush1.msra.mxu0 0.0
    %82 = vmatprep.subr.mxu0 0.0
    %83 = vmatpush1.msra.mxu0 0.0
    %84 = vmatprep.subr.mxu0 0.0
    %85 = vmatpush1.msra.mxu0 0.0
    %86 = vmatprep.subr.mxu0 0.0
    %87 = vmatpush1.msra.mxu0 0.0
    %88 = vmatprep.subr.mxu0 0.0
    %89 = vmatpush1.msra.mxu0 0.0
    %90 = vmatprep.subr.mxu0 0.0
    %91 = vmatpush1.msra.mxu0 0.0
    %92 = vmatprep.subr.mxu0 0.0
    %93 = vmatpush1.msra.mxu0 0.0
    %94 = vmatprep.subr.mxu0 0.0
    %95 = vmatpush1.msra.mxu0 0.0
    %96 = vmatprep.subr.mxu0 0.0
    %97 = vmatpush1.msra.mxu0 0.0
    %98 = vmatprep.mubr.f32.mxu0 0.0
    %99 = vmatmul.mubr.f32.gmra.mrb[0].mxu0 %v29
    %v100 = vpop.f32.mrb[0].mxu0
    %v101 = vadd.f32 0.0, %v100
    %v102 = vpop.f32.mrb[0].mxu0
    %103 = vmatprep.mubr.f32.mxu0 0.0
    %104 = vmatmul.mubr.f32.gmra.mrb[0].mxu0 %v32
    %v105 = vpop.f32.mrb[0].mxu0
    %v106 = vadd.f32 0.0, %v105
    %v107 = vpop.f32.mrb[0].mxu0
    %108 = vdwg.mxu0
    %v110 = vsel %vm27, %v17, 0
    %v113 = vsel %vm27, %v18, 0
    %115 = vmatprep.subr.mxu0 0.0
    %116 = vmatpush1.msra.mxu0 %v23
    %117 = vmatprep.subr.mxu0 0.0
    %118 = vmatpush1.msra.mxu0 %v24
    %119 = vmatprep.subr.mxu0 0.0
    %120 = vmatpush1.msra.mxu0 0.0
    %121 = vmatprep.subr.mxu0 0.0
    %122 = vmatpush1.msra.mxu0 0.0
    %123 = vmatprep.subr.mxu0 0.0
    %124 = vmatpush1.msra.mxu0 0.0
    %125 = vmatprep.subr.mxu0 0.0
    %126 = vmatpush1.msra.mxu0 0.0
    %127 = vmatprep.subr.mxu0 0.0
    %128 = vmatpush1.msra.mxu0 0.0
    %129 = vmatprep.subr.mxu0 0.0
    %130 = vmatpush1.msra.mxu0 0.0
    %131 = vmatprep.subr.mxu0 0.0
    %132 = vmatpush1.msra.mxu0 0.0
    %133 = vmatprep.subr.mxu0 0.0
    %134 = vmatpush1.msra.mxu0 0.0
    %135 = vmatprep.subr.mxu0 0.0
    %136 = vmatpush1.msra.mxu0 0.0
    %137 = vmatprep.subr.mxu0 0.0
    %138 = vmatpush1.msra.mxu0 0.0
    %139 = vmatprep.subr.mxu0 0.0
    %140 = vmatpush1.msra.mxu0 0.0
    %141 = vmatprep.subr.mxu0 0.0
    %142 = vmatpush1.msra.mxu0 0.0
    %143 = vmatprep.subr.mxu0 0.0
    %144 = vmatpush1.msra.mxu0 0.0
    %145 = vmatprep.subr.mxu0 0.0
    %146 = vmatpush1.msra.mxu0 0.0
    %147 = vmatprep.subr.mxu0 0.0
    %148 = vmatpush1.msra.mxu0 0.0
    %149 = vmatprep.subr.mxu0 0.0
    %150 = vmatpush1.msra.mxu0 0.0
    %151 = vmatprep.subr.mxu0 0.0
    %152 = vmatpush1.msra.mxu0 0.0
    %153 = vmatprep.subr.mxu0 0.0
    %154 = vmatpush1.msra.mxu0 0.0
    %155 = vmatprep.subr.mxu0 0.0
    %156 = vmatpush1.msra.mxu0 0.0
    %157 = vmatprep.subr.mxu0 0.0
    %158 = vmatpush1.msra.mxu0 0.0
    %159 = vmatprep.subr.mxu0 0.0
    %160 = vmatpush1.msra.mxu0 0.0
    %161 = vmatprep.subr.mxu0 0.0
    %162 = vmatpush1.msra.mxu0 0.0
    %163 = vmatprep.subr.mxu0 0.0
    %164 = vmatpush1.msra.mxu0 0.0
    %165 = vmatprep.subr.mxu0 0.0
    %166 = vmatpush1.msra.mxu0 0.0
    %167 = vmatprep.subr.mxu0 0.0
    %168 = vmatpush1.msra.mxu0 0.0
    %169 = vmatprep.subr.mxu0 0.0
    %170 = vmatpush1.msra.mxu0 0.0
    %171 = vmatprep.subr.mxu0 0.0
    %172 = vmatpush1.msra.mxu0 0.0
    %173 = vmatprep.subr.mxu0 0.0
    %174 = vmatpush1.msra.mxu0 0.0
    %175 = vmatprep.subr.mxu0 0.0
    %176 = vmatpush1.msra.mxu0 0.0
    %177 = vmatprep.subr.mxu0 0.0
    %178 = vmatpush1.msra.mxu0 0.0
    %179 = vmatprep.mubr.f32.mxu0 0.0
    %180 = vmatmul.mubr.f32.gmra.mrb[0].mxu0 %v110
    %v181 = vpop.f32.mrb[0].mxu0
    %v182 = vadd.f32 0.0, %v181
    %v183 = vpop.f32.mrb[0].mxu0
    %184 = vmatprep.mubr.f32.mxu0 0.0
    %185 = vmatmul.mubr.f32.gmra.mrb[0].mxu0 %v113
    %v186 = vpop.f32.mrb[0].mxu0
    %v187 = vadd.f32 0.0, %v186
    %v188 = vpop.f32.mrb[0].mxu0
    %189 = vdwg.mxu0
    %v191 = vsel %vm27, %v19, 0
    %v194 = vsel %vm27, %v20, 0
    %196 = vmatprep.subr.mxu0 0.0
    %197 = vmatpush1.msra.mxu0 %v25
    %198 = vmatprep.subr.mxu0 0.0
    %199 = vmatpush1.msra.mxu0 %v26
    %200 = vmatprep.subr.mxu0 0.0
    %201 = vmatpush1.msra.mxu0 0.0
    %202 = vmatprep.subr.mxu0 0.0
    %203 = vmatpush1.msra.mxu0 0.0
    %204 = vmatprep.subr.mxu0 0.0
    %205 = vmatpush1.msra.mxu0 0.0
    %206 = vmatprep.subr.mxu0 0.0
    %207 = vmatpush1.msra.mxu0 0.0
    %208 = vmatprep.subr.mxu0 0.0
    %209 = vmatpush1.msra.mxu0 0.0
    %210 = vmatprep.subr.mxu0 0.0
    %211 = vmatpush1.msra.mxu0 0.0
    %212 = vmatprep.subr.mxu0 0.0
    %213 = vmatpush1.msra.mxu0 0.0
    %214 = vmatprep.subr.mxu0 0.0
    %215 = vmatpush1.msra.mxu0 0.0
    %216 = vmatprep.subr.mxu0 0.0
    %217 = vmatpush1.msra.mxu0 0.0
    %218 = vmatprep.subr.mxu0 0.0
    %219 = vmatpush1.msra.mxu0 0.0
    %220 = vmatprep.subr.mxu0 0.0
    %221 = vmatpush1.msra.mxu0 0.0
    %222 = vmatprep.subr.mxu0 0.0
    %223 = vmatpush1.msra.mxu0 0.0
    %224 = vmatprep.subr.mxu0 0.0
    %225 = vmatpush1.msra.mxu0 0.0
    %226 = vmatprep.subr.mxu0 0.0
    %227 = vmatpush1.msra.mxu0 0.0
    %228 = vmatprep.subr.mxu0 0.0
    %229 = vmatpush1.msra.mxu0 0.0
    %230 = vmatprep.subr.mxu0 0.0
    %231 = vmatpush1.msra.mxu0 0.0
    %232 = vmatprep.subr.mxu0 0.0
    %233 = vmatpush1.msra.mxu0 0.0
    %234 = vmatprep.subr.mxu0 0.0
    %235 = vmatpush1.msra.mxu0 0.0
    %236 = vmatprep.subr.mxu0 0.0
    %237 = vmatpush1.msra.mxu0 0.0
    %238 = vmatprep.subr.mxu0 0.0
    %239 = vmatpush1.msra.mxu0 0.0
    %240 = vmatprep.subr.mxu0 0.0
    %241 = vmatpush1.msra.mxu0 0.0
    %242 = vmatprep.subr.mxu0 0.0
    %243 = vmatpush1.msra.mxu0 0.0
    %244 = vmatprep.subr.mxu0 0.0
    %245 = vmatpush1.msra.mxu0 0.0
    %246 = vmatprep.subr.mxu0 0.0
    %247 = vmatpush1.msra.mxu0 0.0
    %248 = vmatprep.subr.mxu0 0.0
    %249 = vmatpush1.msra.mxu0 0.0
    %250 = vmatprep.subr.mxu0 0.0
    %251 = vmatpush1.msra.mxu0 0.0
    %252 = vmatprep.subr.mxu0 0.0
    %253 = vmatpush1.msra.mxu0 0.0
    %254 = vmatprep.subr.mxu0 0.0
    %255 = vmatpush1.msra.mxu0 0.0
    %256 = vmatprep.subr.mxu0 0.0
    %257 = vmatpush1.msra.mxu0 0.0
    %258 = vmatprep.subr.mxu0 0.0
    %259 = vmatpush1.msra.mxu0 0.0
    %260 = vmatprep.mubr.f32.mxu0 0.0
    %261 = vmatmul.mubr.f32.gmra.mrb[0].mxu0 %v191
    %v262 = vpop.f32.mrb[0].mxu0
    %v263 = vadd.f32 0.0, %v262
    %v264 = vpop.f32.mrb[0].mxu0
    %265 = vmatprep.mubr.f32.mxu0 0.0
    %266 = vmatmul.mubr.f32.gmra.mrb[0].mxu0 %v194
    %v267 = vpop.f32.mrb[0].mxu0
    %v268 = vadd.f32 0.0, %v267
    %v269 = vpop.f32.mrb[0].mxu0
    %270 = vdwg.mxu0
    %v271 = vld [vmem:[%s1] sm:$0xff]
    %v272 = vld [vmem:[%s1 + $0x8] sm:$0xff]
    %v273 = vld [vmem:[%s1 + $0x10] sm:$0xff]
    %v274 = vld [vmem:[%s1 + $0x18] sm:$0xff]
    %v275 = vld [vmem:[%s1 + $0x20] sm:$0xff]
    %v276 = vld [vmem:[%s1 + $0x28] sm:$0xff]
    %v277 = vld [vmem:[%s1 + $0x30] sm:$0xff]
    %v278 = vld [vmem:[%s1 + $0x38] sm:$0xff]
    %v279 = vld [vmem:[%s1 + $0x40] sm:$0xff]
    %vm280 = vcmask 97280
    %v282 = vsel %vm280, %v271, 0
    %v285 = vsel %vm280, %v272, 0
    %v288 = vsel %vm280, %v273, 0
    %vm290 = vcmask 1043456
    %v292 = vsel %vm290, %v106, 0
    %294 = vmatprep.subr.mxu0 0.0
    %295 = vmatpush1.msra.mxu0 %v101
    %296 = vmatprep.subr.mxu0 0.0
    %297 = vmatpush1.msra.mxu0 %v292
    %298 = vmatprep.subr.mxu0 0.0
    %299 = vmatpush1.msra.mxu0 0.0
    %300 = vmatprep.subr.mxu0 0.0
    %301 = vmatpush1.msra.mxu0 0.0
    %302 = vmatprep.subr.mxu0 0.0
    %303 = vmatpush1.msra.mxu0 0.0
    %304 = vmatprep.subr.mxu0 0.0
    %305 = vmatpush1.msra.mxu0 0.0
    %306 = vmatprep.subr.mxu0 0.0
    %307 = vmatpush1.msra.mxu0 0.0
    %308 = vmatprep.subr.mxu0 0.0
    %309 = vmatpush1.msra.mxu0 0.0
    %310 = vmatprep.subr.mxu0 0.0
    %311 = vmatpush1.msra.mxu0 0.0
    %312 = vmatprep.subr.mxu0 0.0
    %313 = vmatpush1.msra.mxu0 0.0
    %314 = vmatprep.subr.mxu0 0.0
    %315 = vmatpush1.msra.mxu0 0.0
    %316 = vmatprep.subr.mxu0 0.0
    %317 = vmatpush1.msra.mxu0 0.0
    %318 = vmatprep.subr.mxu0 0.0
    %319 = vmatpush1.msra.mxu0 0.0
    %320 = vmatprep.subr.mxu0 0.0
    %321 = vmatpush1.msra.mxu0 0.0
    %322 = vmatprep.subr.mxu0 0.0
    %323 = vmatpush1.msra.mxu0 0.0
    %324 = vmatprep.subr.mxu0 0.0
    %325 = vmatpush1.msra.mxu0 0.0
    %326 = vmatprep.subr.mxu0 0.0
    %327 = vmatpush1.msra.mxu0 0.0
    %328 = vmatprep.subr.mxu0 0.0
    %329 = vmatpush1.msra.mxu0 0.0
    %330 = vmatprep.subr.mxu0 0.0
    %331 = vmatpush1.msra.mxu0 0.0
    %332 = vmatprep.subr.mxu0 0.0
    %333 = vmatpush1.msra.mxu0 0.0
    %334 = vmatprep.subr.mxu0 0.0
    %335 = vmatpush1.msra.mxu0 0.0
    %336 = vmatprep.subr.mxu0 0.0
    %337 = vmatpush1.msra.mxu0 0.0
    %338 = vmatprep.subr.mxu0 0.0
    %339 = vmatpush1.msra.mxu0 0.0
    %340 = vmatprep.subr.mxu0 0.0
    %341 = vmatpush1.msra.mxu0 0.0
    %342 = vmatprep.subr.mxu0 0.0
    %343 = vmatpush1.msra.mxu0 0.0
    %344 = vmatprep.subr.mxu0 0.0
    %345 = vmatpush1.msra.mxu0 0.0
    %346 = vmatprep.subr.mxu0 0.0
    %347 = vmatpush1.msra.mxu0 0.0
    %348 = vmatprep.subr.mxu0 0.0
    %349 = vmatpush1.msra.mxu0 0.0
    %350 = vmatprep.subr.mxu0 0.0
    %351 = vmatpush1.msra.mxu0 0.0
    %352 = vmatprep.subr.mxu0 0.0
    %353 = vmatpush1.msra.mxu0 0.0
    %354 = vmatprep.subr.mxu0 0.0
    %355 = vmatpush1.msra.mxu0 0.0
    %356 = vmatprep.subr.mxu0 0.0
    %357 = vmatpush1.msra.mxu0 0.0
    %358 = vmatprep.mubr.f32.mxu0 0.0
    %359 = vmatmul.mubr.f32.gmra.mrb[0].mxu0 %v282
    %v360 = vpop.f32.mrb[0].mxu0
    %v361 = vadd.f32 0.0, %v360
    %v362 = vpop.f32.mrb[0].mxu0
    %363 = vmatprep.mubr.f32.mxu0 0.0
    %364 = vmatmul.mubr.f32.gmra.mrb[0].mxu0 %v285
    %v365 = vpop.f32.mrb[0].mxu0
    %v366 = vadd.f32 0.0, %v365
    %v367 = vpop.f32.mrb[0].mxu0
    %368 = vmatprep.mubr.f32.mxu0 0.0
    %369 = vmatmul.mubr.f32.gmra.mrb[0].mxu0 %v288
    %v370 = vpop.f32.mrb[0].mxu0
    %v371 = vadd.f32 0.0, %v370
    %v372 = vpop.f32.mrb[0].mxu0
    %373 = vdwg.mxu0
    %v375 = vsel %vm280, %v274, 0
    %v378 = vsel %vm280, %v275, 0
    %v381 = vsel %vm280, %v276, 0
    %v384 = vsel %vm290, %v187, 0
    %386 = vmatprep.subr.mxu0 0.0
    %387 = vmatpush1.msra.mxu0 %v182
    %388 = vmatprep.subr.mxu0 0.0
    %389 = vmatpush1.msra.mxu0 %v384
    %390 = vmatprep.subr.mxu0 0.0
    %391 = vmatpush1.msra.mxu0 0.0
    %392 = vmatprep.subr.mxu0 0.0
    %393 = vmatpush1.msra.mxu0 0.0
    %394 = vmatprep.subr.mxu0 0.0
    %395 = vmatpush1.msra.mxu0 0.0
    %396 = vmatprep.subr.mxu0 0.0
    %397 = vmatpush1.msra.mxu0 0.0
    %398 = vmatprep.subr.mxu0 0.0
    %399 = vmatpush1.msra.mxu0 0.0
    %400 = vmatprep.subr.mxu0 0.0
    %401 = vmatpush1.msra.mxu0 0.0
    %402 = vmatprep.subr.mxu0 0.0
    %403 = vmatpush1.msra.mxu0 0.0
    %404 = vmatprep.subr.mxu0 0.0
    %405 = vmatpush1.msra.mxu0 0.0
    %406 = vmatprep.subr.mxu0 0.0
    %407 = vmatpush1.msra.mxu0 0.0
    %408 = vmatprep.subr.mxu0 0.0
    %409 = vmatpush1.msra.mxu0 0.0
    %410 = vmatprep.subr.mxu0 0.0
    %411 = vmatpush1.msra.mxu0 0.0
    %412 = vmatprep.subr.mxu0 0.0
    %413 = vmatpush1.msra.mxu0 0.0
    %414 = vmatprep.subr.mxu0 0.0
    %415 = vmatpush1.msra.mxu0 0.0
    %416 = vmatprep.subr.mxu0 0.0
    %417 = vmatpush1.msra.mxu0 0.0
    %418 = vmatprep.subr.mxu0 0.0
    %419 = vmatpush1.msra.mxu0 0.0
    %420 = vmatprep.subr.mxu0 0.0
    %421 = vmatpush1.msra.mxu0 0.0
    %422 = vmatprep.subr.mxu0 0.0
    %423 = vmatpush1.msra.mxu0 0.0
    %424 = vmatprep.subr.mxu0 0.0
    %425 = vmatpush1.msra.mxu0 0.0
    %426 = vmatprep.subr.mxu0 0.0
    %427 = vmatpush1.msra.mxu0 0.0
    %428 = vmatprep.subr.mxu0 0.0
    %429 = vmatpush1.msra.mxu0 0.0
    %430 = vmatprep.subr.mxu0 0.0
    %431 = vmatpush1.msra.mxu0 0.0
    %432 = vmatprep.subr.mxu0 0.0
    %433 = vmatpush1.msra.mxu0 0.0
    %434 = vmatprep.subr.mxu0 0.0
    %435 = vmatpush1.msra.mxu0 0.0
    %436 = vmatprep.subr.mxu0 0.0
    %437 = vmatpush1.msra.mxu0 0.0
    %438 = vmatprep.subr.mxu0 0.0
    %439 = vmatpush1.msra.mxu0 0.0
    %440 = vmatprep.subr.mxu0 0.0
    %441 = vmatpush1.msra.mxu0 0.0
    %442 = vmatprep.subr.mxu0 0.0
    %443 = vmatpush1.msra.mxu0 0.0
    %444 = vmatprep.subr.mxu0 0.0
    %445 = vmatpush1.msra.mxu0 0.0
    %446 = vmatprep.subr.mxu0 0.0
    %447 = vmatpush1.msra.mxu0 0.0
    %448 = vmatprep.subr.mxu0 0.0
    %449 = vmatpush1.msra.mxu0 0.0
    %450 = vmatprep.mubr.f32.mxu0 0.0
    %451 = vmatmul.mubr.f32.gmra.mrb[0].mxu0 %v375
    %v452 = vpop.f32.mrb[0].mxu0
    %v453 = vadd.f32 0.0, %v452
    %v454 = vpop.f32.mrb[0].mxu0
    %455 = vmatprep.mubr.f32.mxu0 0.0
    %456 = vmatmul.mubr.f32.gmra.mrb[0].mxu0 %v378
    %v457 = vpop.f32.mrb[0].mxu0
    %v458 = vadd.f32 0.0, %v457
    %v459 = vpop.f32.mrb[0].mxu0
    %460 = vmatprep.mubr.f32.mxu0 0.0
    %461 = vmatmul.mubr.f32.gmra.mrb[0].mxu0 %v381
    %v462 = vpop.f32.mrb[0].mxu0
    %v463 = vadd.f32 0.0, %v462
    %v464 = vpop.f32.mrb[0].mxu0
    %465 = vdwg.mxu0
    %v467 = vsel %vm280, %v277, 0
    %v470 = vsel %vm280, %v278, 0
    %v473 = vsel %vm280, %v279, 0
    %v476 = vsel %vm290, %v268, 0
    %478 = vmatprep.subr.mxu0 0.0
    %479 = vmatpush1.msra.mxu0 %v263
    %480 = vmatprep.subr.mxu0 0.0
    %481 = vmatpush1.msra.mxu0 %v476
    %482 = vmatprep.subr.mxu0 0.0
    %483 = vmatpush1.msra.mxu0 0.0
    %484 = vmatprep.subr.mxu0 0.0
    %485 = vmatpush1.msra.mxu0 0.0
    %486 = vmatprep.subr.mxu0 0.0
    %487 = vmatpush1.msra.mxu0 0.0
    %488 = vmatprep.subr.mxu0 0.0
    %489 = vmatpush1.msra.mxu0 0.0
    %490 = vmatprep.subr.mxu0 0.0
    %491 = vmatpush1.msra.mxu0 0.0
    %492 = vmatprep.subr.mxu0 0.0
    %493 = vmatpush1.msra.mxu0 0.0
    %494 = vmatprep.subr.mxu0 0.0
    %495 = vmatpush1.msra.mxu0 0.0
    %496 = vmatprep.subr.mxu0 0.0
    %497 = vmatpush1.msra.mxu0 0.0
    %498 = vmatprep.subr.mxu0 0.0
    %499 = vmatpush1.msra.mxu0 0.0
    %500 = vmatprep.subr.mxu0 0.0
    %501 = vmatpush1.msra.mxu0 0.0
    %502 = vmatprep.subr.mxu0 0.0
    %503 = vmatpush1.msra.mxu0 0.0
    %504 = vmatprep.subr.mxu0 0.0
    %505 = vmatpush1.msra.mxu0 0.0
    %506 = vmatprep.subr.mxu0 0.0
    %507 = vmatpush1.msra.mxu0 0.0
    %508 = vmatprep.subr.mxu0 0.0
    %509 = vmatpush1.msra.mxu0 0.0
    %510 = vmatprep.subr.mxu0 0.0
    %511 = vmatpush1.msra.mxu0 0.0
    %512 = vmatprep.subr.mxu0 0.0
    %513 = vmatpush1.msra.mxu0 0.0
    %514 = vmatprep.subr.mxu0 0.0
    %515 = vmatpush1.msra.mxu0 0.0
    %516 = vmatprep.subr.mxu0 0.0
    %517 = vmatpush1.msra.mxu0 0.0
    %518 = vmatprep.subr.mxu0 0.0
    %519 = vmatpush1.msra.mxu0 0.0
    %520 = vmatprep.subr.mxu0 0.0
    %521 = vmatpush1.msra.mxu0 0.0
    %522 = vmatprep.subr.mxu0 0.0
    %523 = vmatpush1.msra.mxu0 0.0
    %524 = vmatprep.subr.mxu0 0.0
    %525 = vmatpush1.msra.mxu0 0.0
    %526 = vmatprep.subr.mxu0 0.0
    %527 = vmatpush1.msra.mxu0 0.0
    %528 = vmatprep.subr.mxu0 0.0
    %529 = vmatpush1.msra.mxu0 0.0
    %530 = vmatprep.subr.mxu0 0.0
    %531 = vmatpush1.msra.mxu0 0.0
    %532 = vmatprep.subr.mxu0 0.0
    %533 = vmatpush1.msra.mxu0 0.0
    %534 = vmatprep.subr.mxu0 0.0
    %535 = vmatpush1.msra.mxu0 0.0
    %536 = vmatprep.subr.mxu0 0.0
    %537 = vmatpush1.msra.mxu0 0.0
    %538 = vmatprep.subr.mxu0 0.0
    %539 = vmatpush1.msra.mxu0 0.0
    %540 = vmatprep.subr.mxu0 0.0
    %541 = vmatpush1.msra.mxu0 0.0
    %542 = vmatprep.mubr.f32.mxu0 0.0
    %543 = vmatmul.mubr.f32.gmra.mrb[0].mxu0 %v467
    %v544 = vpop.f32.mrb[0].mxu0
    %v545 = vadd.f32 0.0, %v544
    %v546 = vpop.f32.mrb[0].mxu0
    %547 = vmatprep.mubr.f32.mxu0 0.0
    %548 = vmatmul.mubr.f32.gmra.mrb[0].mxu0 %v470
    %v549 = vpop.f32.mrb[0].mxu0
    %v550 = vadd.f32 0.0, %v549
    %v551 = vpop.f32.mrb[0].mxu0
    %552 = vmatprep.mubr.f32.mxu0 0.0
    %553 = vmatmul.mubr.f32.gmra.mrb[0].mxu0 %v473
    %v554 = vpop.f32.mrb[0].mxu0
    %v555 = vadd.f32 0.0, %v554
    %v556 = vpop.f32.mrb[0].mxu0
    %557 = vdwg.mxu0
    %558 = vst [vmem:[#allocation2] sm:$0xff] %v361
    %559 = vst [vmem:[#allocation2 + $0x8] sm:$0xff] %v366
    %560 = vst [vmem:[#allocation2 + $0x10] sm:$0xff] %v371
    %561 = vst [vmem:[#allocation2 + $0x18] sm:$0xff] %v453
    %562 = vst [vmem:[#allocation2 + $0x20] sm:$0xff] %v458
    %563 = vst [vmem:[#allocation2 + $0x28] sm:$0xff] %v463
    %564 = vst [vmem:[#allocation2 + $0x30] sm:$0xff] %v545
    %565 = vst [vmem:[#allocation2 + $0x38] sm:$0xff] %v550
    %566 = vst [vmem:[#allocation2 + $0x40] sm:$0xff] %v555
    // Predicated region
    $region14: #{tpu_custom_call.1} parent=1 // pred_check
      _
    $region15: #{tpu_custom_call.1} parent=1 // pred_check_branch
      %568 = sbr.rel (0) target = $region17
    $region16: #{tpu_custom_call.1} parent=1 // pred_region
      %s570 = ssub.s32 1152, 1152
      %571 = vsyncadd [#allocation3], %s570
      %s572 = sshll.u32 [#allocation2], 4
      %s573 = int_to_ptr.vmem [resolvable:$true] %s572
      %578 = dma.vmem_to_hbm [thread:$0]  %s573, 1152, %s3, [#allocation3], 128, 128, 8
    $region17: #{tpu_custom_call.1} parent=1 // pred_fallthru
      _
    // Predicated region
    $region18: #{tpu_custom_call.1} parent=1 // pred_check
      _
    $region19: #{tpu_custom_call.1} parent=1 // pred_check_branch
      %580 = sbr.rel (0) target = $region21
    $region20: #{tpu_custom_call.1} parent=1 // pred_region
      %581 = dma.done [#allocation3], 1152
    $region21: #{tpu_custom_call.1} parent=1 // pred_fallthru
      _
    %582 = vsyncpa [#allocation3], 1

</llo_original>
